<compile_context>
chip_gen: v5e
topology: v5e:2x2
jax: 0.10.0
libtpu: 0.0.40
codegen_flags: <defaults>
</compile_context>

<pallas_src>
import functools

import jax
import jax.numpy as jnp
from jax.experimental import pallas as pl
from jax.experimental.pallas import tpu as pltpu

# Large-but-finite pad value for extra points: d_pad * SENTINEL^2 << f32 max,
# yet SENTINEL^2 dwarfs any realistic squared distance.  (inf is not usable:
# inf - inf = NaN in the norm expansion.)
_SENTINEL = 1e17


def _round_up(x, m):
    return (x + m - 1) // m * m


def _wrapping_loss_kernel(p_hat_ref, p_t_ref, row_min_ref, col_min_ref, *, tn):
    i = pl.program_id(1)      # row-tile index within this core's share
    j = pl.program_id(2)      # column-tile index (innermost)

    # row_min block is resident while j sweeps; init at the first column tile.
    @pl.when(j == 0)
    def _():
        row_min_ref[...] = jnp.full(row_min_ref.shape, jnp.inf, jnp.float32)

    # This core's col-min partial is resident for its whole grid share.
    @pl.when((i == 0) & (j == 0))
    def _():
        col_min_ref[...] = jnp.full(col_min_ref.shape, jnp.inf, jnp.float32)

    a = p_hat_ref[...]                        # (tm, d_pad) feature-last, native dtype
    b = p_t_ref[...]                          # (d_pad, tn) feature-first (lane-dense)

    # ||a - b||^2 = ||a||^2 + ||b||^2 - 2 a.b ; fold the -2 into the tiny LHS
    # operand so the hot (tm, tn) combine needs no full-tile multiply.
    neg2a = a * jnp.asarray(-2.0, a.dtype)    # exact power-of-two scale, tm*d elems
    dot = jnp.dot(neg2a, b, preferred_element_type=jnp.float32)   # (tm, tn) on MXU
    a32 = a.astype(jnp.float32)
    b32 = b.astype(jnp.float32)
    sq_a = jnp.sum(a32 * a32, axis=1, keepdims=True)              # (tm, 1)
    sq_b = jnp.sum(b32 * b32, axis=0, keepdims=True)              # (1, tn)
    dists = jnp.maximum(sq_a + (sq_b + dot), 0.0)                 # (tm, tn) >= 0

    # Row-wise running min into the block-resident (tm, 1) accumulator.
    row_min_ref[...] = jnp.minimum(
        row_min_ref[...], jnp.min(dists, axis=1, keepdims=True))

    # Column-wise running min into this core's resident (1, 1, n_pad) partial.
    n_start = pl.multiple_of(j * tn, tn)
    col_part = jnp.min(dists, axis=0, keepdims=True)[None]        # (1, 1, tn)
    cur = col_min_ref[:, :, pl.ds(n_start, tn)]
    col_min_ref[:, :, pl.ds(n_start, tn)] = jnp.minimum(cur, col_part)


def wrapping_loss(p_hat, p, *, tm=256, tn=2048):
    """Forward pass of WrappingLoss: p_hat (M, D), p (N, D) -> scalar loss."""
    m, d = p_hat.shape
    n, d2 = p.shape
    assert d == d2, "p_hat and p must have the same feature dimension"

    # Cap tiles to the (padded) problem so small inputs run a single grid step.
    tm = min(tm, _round_up(m, 8))
    tn = min(tn, _round_up(n, 128))
    m_pad = _round_up(m, tm)
    n_pad = _round_up(n, tn)
    d_pad = _round_up(d, 8)

    # Feature padding is zero (contributes 0 to every distance).  Extra
    # *points* are filled with a huge finite sentinel so they never win a min;
    # their (garbage) min entries are sliced off below.
    def pad_points(x, rows_pad):
        out = jnp.zeros((rows_pad, d_pad), x.dtype).at[:x.shape[0], :d].set(x)
        if rows_pad > x.shape[0]:
            out = out.at[x.shape[0]:, :].set(jnp.asarray(_SENTINEL, x.dtype))
        return out

    p_hat_p = pad_points(p_hat, m_pad)        # (m_pad, d_pad) feature-last
    p_t = pad_points(p, n_pad).T              # (d_pad, n_pad) feature-first

    num_m = m_pad // tm
    num_n = n_pad // tn

    # v7x megacore: shard the row-tile axis across 2 TensorCores when it splits
    # evenly; each core keeps its own col-min partial.  Harmless on 1-TC chips.
    nc = 2 if (num_m >= 2 and num_m % 2 == 0) else 1
    num_m_per_core = num_m // nc

    kernel = functools.partial(_wrapping_loss_kernel, tn=tn)

    itemsize = jnp.dtype(p_hat_p.dtype).itemsize
    cost = pl.CostEstimate(
        flops=2 * m_pad * n_pad * d_pad + 5 * m_pad * n_pad,
        transcendentals=0,
        bytes_accessed=itemsize * (m_pad * d_pad * num_n + n_pad * d_pad * num_m)
        + 4 * (m_pad + nc * n_pad),
    )

    row_min, col_min = pl.pallas_call(
        kernel,
        out_shape=(jax.ShapeDtypeStruct((m_pad, 1), jnp.float32),
                   jax.ShapeDtypeStruct((nc, 1, n_pad), jnp.float32)),
        grid_spec=pltpu.PrefetchScalarGridSpec(
            num_scalar_prefetch=0,
            grid=(nc, num_m_per_core, num_n),
            in_specs=[
                pl.BlockSpec((tm, d_pad),
                             lambda c, i, j: (c * num_m_per_core + i, 0)),
                pl.BlockSpec((d_pad, tn), lambda c, i, j: (0, j)),
            ],
            out_specs=(
                pl.BlockSpec((tm, 1),
                             lambda c, i, j: (c * num_m_per_core + i, 0)),
                pl.BlockSpec((1, 1, n_pad), lambda c, i, j: (c, 0, 0)),
            ),
        ),
        compiler_params=pltpu.CompilerParams(
            dimension_semantics=("parallel", "arbitrary", "arbitrary")),
        cost_estimate=cost,
    )(p_hat_p, p_t)

    # Combine per-core col-min partials and take the means over valid entries.
    col_min = jnp.min(col_min[:, 0, :], axis=0)     # (n_pad,)
    l_dim1 = jnp.mean(row_min[:m, 0])               # torch.min(dists, dim=1)[0].mean()
    l_dim0 = jnp.mean(col_min[:n])                  # torch.min(dists, dim=0)[0].mean()
    return l_dim0 + l_dim1


def _reference(p_hat, p):
    diff = p_hat[:, None, :] - p[None, :, :]
    dists = jnp.sum(diff * diff, axis=-1)
    return jnp.mean(jnp.min(dists, axis=0)) + jnp.mean(jnp.min(dists, axis=1))


if __name__ == "__main__":
    key = jax.random.PRNGKey(0)
    k0, k1, k2, k3 = jax.random.split(key, 4)

    # Case 1: odd sizes -> exercises sentinel padding of both rows and columns.
    p_hat = jax.random.normal(k0, (197, 3), dtype=jnp.float32)
    p = jax.random.normal(k1, (300, 3), dtype=jnp.float32)
    loss = jax.block_until_ready(wrapping_loss(p_hat, p))
    ref = _reference(p_hat, p)
    assert jnp.allclose(loss, ref, rtol=1e-4, atol=1e-4), (loss, ref)

    # Case 2: multiple row tiles -> exercises the 2-way core split and the
    # per-core col-min partial combine.
    p_hat2 = jax.random.normal(k2, (512, 3), dtype=jnp.float32)
    p2 = jax.random.normal(k3, (1300, 3), dtype=jnp.float32)
    loss2 = jax.block_until_ready(wrapping_loss(p_hat2, p2))
    ref2 = _reference(p_hat2, p2)
    assert jnp.allclose(loss2, ref2, rtol=1e-4, atol=1e-4), (loss2, ref2)

    print("KERNEL_OK")
</pallas_src>

<mosaic_0001>
module attributes {stable_mosaic.version = 11 : i64} {
  func.func @_wrapping_loss_kernel(%arg0: i32, %arg1: i32, %arg2: i32, %arg3: memref<200x8xf32, #tpu.memory_space<vmem>>, %arg4: memref<8x384xf32, #tpu.memory_space<vmem>>, %arg5: memref<200x1xf32, #tpu.memory_space<vmem>>, %arg6: memref<1x1x384xf32, #tpu.memory_space<vmem>>) attributes {dimension_semantics = [#tpu.dimension_semantics<parallel>, #tpu.dimension_semantics<arbitrary>, #tpu.dimension_semantics<arbitrary>], iteration_bounds = array<i64: 1, 1, 1>, scalar_prefetch = 0 : i64, scratch_operands = 0 : i64, tpu.core_type = #tpu.core_type<tc>, window_params = [{transform_indices = @transform_0, window_bounds = array<i64: 200, 8>}, {transform_indices = @transform_1, window_bounds = array<i64: 8, 384>}, {transform_indices = @transform_2, window_bounds = array<i64: 200, 1>}, {transform_indices = @transform_3, window_bounds = array<i64: 1, 1, 384>}]} {
    %c0_i32 = arith.constant 0 : i32
    %0 = arith.cmpi eq, %arg2, %c0_i32 : i32
    %1 = arith.extui %0 : i1 to i32
    %c0_i32_0 = arith.constant 0 : i32
    %2 = arith.cmpi ne, %1, %c0_i32_0 : i32
    scf.if %2 {
      %cst_21 = arith.constant 0x7F800000 : f32
      %40 = vector.broadcast %cst_21 : f32 to vector<200x1xf32>
      %c0_22 = arith.constant 0 : index
      %c0_23 = arith.constant 0 : index
      %41 = vector.load %arg5[%c0_22, %c0_23] : memref<200x1xf32, #tpu.memory_space<vmem>>, vector<200x1xf32>
      tpu.vector_store %arg5[%c0_22, %c0_23], %40 {strides = array<i32>} : memref<200x1xf32, #tpu.memory_space<vmem>>, vector<200x1xf32>,
    } else {
    }
    %c0_i32_1 = arith.constant 0 : i32
    %3 = arith.cmpi eq, %arg1, %c0_i32_1 : i32
    %c0_i32_2 = arith.constant 0 : i32
    %4 = arith.cmpi eq, %arg2, %c0_i32_2 : i32
    %5 = arith.andi %3, %4 : i1
    %6 = arith.extui %5 : i1 to i32
    %c0_i32_3 = arith.constant 0 : i32
    %7 = arith.cmpi ne, %6, %c0_i32_3 : i32
    scf.if %7 {
      %cst_21 = arith.constant 0x7F800000 : f32
      %40 = vector.broadcast %cst_21 : f32 to vector<1x1x384xf32>
      %c0_22 = arith.constant 0 : index
      %c0_23 = arith.constant 0 : index
      %c0_24 = arith.constant 0 : index
      %41 = vector.load %arg6[%c0_22, %c0_23, %c0_24] : memref<1x1x384xf32, #tpu.memory_space<vmem>>, vector<1x1x384xf32>
      tpu.vector_store %arg6[%c0_22, %c0_23, %c0_24], %40 {strides = array<i32>} : memref<1x1x384xf32, #tpu.memory_space<vmem>>, vector<1x1x384xf32>,
    } else {
    }
    %c0 = arith.constant 0 : index
    %c0_4 = arith.constant 0 : index
    %8 = vector.load %arg3[%c0, %c0_4] : memref<200x8xf32, #tpu.memory_space<vmem>>, vector<200x8xf32>
    %c0_5 = arith.constant 0 : index
    %c0_6 = arith.constant 0 : index
    %9 = vector.load %arg4[%c0_5, %c0_6] : memref<8x384xf32, #tpu.memory_space<vmem>>, vector<8x384xf32>
    %cst = arith.constant -2.000000e+00 : f32
    %10 = vector.broadcast %cst : f32 to vector<200x8xf32>
    %11 = arith.mulf %8, %10 : vector<200x8xf32>
    %cst_7 = arith.constant dense<0.000000e+00> : vector<200x384xf32>
    %12 = tpu.matmul %11, %9, %cst_7 {dimension_numbers = #tpu.dot_dimension_numbers<[1], [0], [0], [1], [0, 0, 1, 1], [], []>} : vector<200x8xf32>, vector<8x384xf32>, vector<200x384xf32> -> vector<200x384xf32>
    %13 = arith.mulf %8, %8 : vector<200x8xf32>
    %cst_8 = arith.constant dense<0.000000e+00> : vector<200xf32>
    %14 = vector.multi_reduction <add>, %13, %cst_8 [1] : vector<200x8xf32> to vector<200xf32>
    %15 = vector.shape_cast %14 : vector<200xf32> to vector<200x1xf32>
    %16 = arith.mulf %9, %9 : vector<8x384xf32>
    %cst_9 = arith.constant dense<0.000000e+00> : vector<384xf32>
    %17 = vector.multi_reduction <add>, %16, %cst_9 [0] : vector<8x384xf32> to vector<384xf32>
    %18 = vector.shape_cast %17 : vector<384xf32> to vector<1x384xf32>
    %19 = vector.broadcast %18 : vector<1x384xf32> to vector<200x384xf32>
    %20 = arith.addf %19, %12 : vector<200x384xf32>
    %21 = vector.broadcast %15 : vector<200x1xf32> to vector<200x384xf32>
    %22 = arith.addf %21, %20 : vector<200x384xf32>
    %cst_10 = arith.constant 0.000000e+00 : f32
    %23 = vector.broadcast %cst_10 : f32 to vector<200x384xf32>
    %24 = arith.maximumf %22, %23 : vector<200x384xf32>
    %c0_11 = arith.constant 0 : index
    %c0_12 = arith.constant 0 : index
    %25 = vector.load %arg5[%c0_11, %c0_12] : memref<200x1xf32, #tpu.memory_space<vmem>>, vector<200x1xf32>
    %cst_13 = arith.constant dense<0x7F800000> : vector<200xf32>
    %26 = vector.multi_reduction <minimumf>, %24, %cst_13 [1] : vector<200x384xf32> to vector<200xf32>
    %27 = vector.shape_cast %26 : vector<200xf32> to vector<200x1xf32>
    %28 = arith.minimumf %25, %27 : vector<200x1xf32>
    %c0_14 = arith.constant 0 : index
    %c0_15 = arith.constant 0 : index
    %29 = vector.load %arg5[%c0_14, %c0_15] : memref<200x1xf32, #tpu.memory_space<vmem>>, vector<200x1xf32>
    tpu.vector_store %arg5[%c0_14, %c0_15], %28 {strides = array<i32>} : memref<200x1xf32, #tpu.memory_space<vmem>>, vector<200x1xf32>,
    %c384_i32 = arith.constant 384 : i32
    %30 = arith.muli %arg2, %c384_i32 : i32
    %31 = tpu.assume_multiple %30, 384 : i32
    %cst_16 = arith.constant dense<0x7F800000> : vector<384xf32>
    %32 = vector.multi_reduction <minimumf>, %24, %cst_16 [0] : vector<200x384xf32> to vector<384xf32>
    %33 = vector.shape_cast %32 : vector<384xf32> to vector<1x384xf32>
    %34 = vector.shape_cast %33 : vector<1x384xf32> to vector<1x1x384xf32>
    %c0_17 = arith.constant 0 : index
    %c0_18 = arith.constant 0 : index
    %35 = arith.index_cast %31 : i32 to index
    %36 = vector.load %arg6[%c0_17, %c0_18, %35] : memref<1x1x384xf32, #tpu.memory_space<vmem>>, vector<1x1x384xf32>
    %37 = arith.minimumf %36, %34 : vector<1x1x384xf32>
    %c0_19 = arith.constant 0 : index
    %c0_20 = arith.constant 0 : index
    %38 = arith.index_cast %31 : i32 to index
    %39 = vector.load %arg6[%c0_19, %c0_20, %38] : memref<1x1x384xf32, #tpu.memory_space<vmem>>, vector<1x1x384xf32>
    tpu.vector_store %arg6[%c0_19, %c0_20, %38], %37 {strides = array<i32>} : memref<1x1x384xf32, #tpu.memory_space<vmem>>, vector<1x1x384xf32>,
    return
  }
  func.func @transform_0(%arg0: i32, %arg1: i32, %arg2: i32) -> (i32, i32) {
    %c1_i32 = arith.constant 1 : i32
    %0 = arith.muli %arg0, %c1_i32 : i32
    %1 = arith.addi %0, %arg1 : i32
    %c0_i32 = arith.constant 0 : i32
    %c0_i32_0 = arith.constant 0 : i32
    return %1, %c0_i32 : i32, i32
  }
  func.func @transform_1(%arg0: i32, %arg1: i32, %arg2: i32) -> (i32, i32) {
    %c0_i32 = arith.constant 0 : i32
    %c0_i32_0 = arith.constant 0 : i32
    return %c0_i32, %arg2 : i32, i32
  }
  func.func @transform_2(%arg0: i32, %arg1: i32, %arg2: i32) -> (i32, i32) {
    %c1_i32 = arith.constant 1 : i32
    %0 = arith.muli %arg0, %c1_i32 : i32
    %1 = arith.addi %0, %arg1 : i32
    %c0_i32 = arith.constant 0 : i32
    %c0_i32_0 = arith.constant 0 : i32
    return %1, %c0_i32 : i32, i32
  }
  func.func @transform_3(%arg0: i32, %arg1: i32, %arg2: i32) -> (i32, i32, i32) {
    %c0_i32 = arith.constant 0 : i32
    %c0_i32_0 = arith.constant 0 : i32
    %c0_i32_1 = arith.constant 0 : i32
    return %arg0, %c0_i32, %c0_i32_0 : i32, i32, i32
  }
}

</mosaic_0001>

<llo_original>
// kernel: tpu_custom_call.1
$region0: #{tpu_custom_call.1}
  #allocation0 [shape = 'u32[]', space=smem, size = 0x4, offset = 0x4, fixed_abs, tag = 'smem constant byte address 0x4 - core index']
  #allocation1 [shape = 'u32[72,128]{1,0:T(1,128)}', space=vmem, size = 0x9000, scoped, tag = 'internal scratch']
  %s0 = inlined_call_operand.vmem [shape: f32[200,8], index: 0, kind: input, shape index: {}]
  %s1 = inlined_call_operand.vmem [shape: f32[8,384], index: 1, kind: input, shape index: {}]
  %s2 = inlined_call_operand.vmem [shape: f32[200,1], index: 2, kind: output, shape index: {0}]
  %s3 = inlined_call_operand.hbm [shape: f32[1,1,384], index: 3, kind: output, shape index: {1}]
  %4 = xla_tuple %s2, %s3
  %s5 = sld [smem:[#allocation0]]
  $region34: #{tpu_custom_call.1} parent=0
    _
  %s7 = ssub.s32 1, %s5
  %s8 = scalar_select 0, %s7, %s5
  $region1: #{tpu_custom_call.1} parent=0
    #allocation2 [shape = 'u8[1536]{0}', space=vmem, size = 0x800, scoped, tag = 'output window, operand 1, single buffered']
    #allocation3 [shape = 's32[1]{0}', space=sflag, size = 0x4, scoped, tag = 'scoped memory for tpu_custom_call.1']
    %9 = vsyncpa [#allocation3], 0
    // Predicated region
    $region2: #{tpu_custom_call.1} parent=1 // pred_check
      _
    $region3: #{tpu_custom_call.1} parent=1 // pred_check_branch
      %11 = sbr.rel (0) target = $region5
    $region4: #{tpu_custom_call.1} parent=1 // pred_region
      %s12 = sadd.s32 0, 0
      %s13 = smul.u32 25, %s12
      %p14 = scmp.lt.s32.totalorder %s13, 24
      %s15 = scalar_select %p14, %s13, 24
      %s16 = smul.addr %s15, 8
      %s17 = scalar_lea.vmem %s0, %s16
      %s18 = sadd.s32 0, 0
      %s19 = smul.u32 25, %s18
    $region5: #{tpu_custom_call.1} parent=1 // pred_fallthru
      _
    // Predicated region
    $region6: #{tpu_custom_call.1} parent=1 // pred_check
      _
    $region7: #{tpu_custom_call.1} parent=1 // pred_check_branch
      %21 = sbr.rel (0) target = $region9
    $region8: #{tpu_custom_call.1} parent=1 // pred_region
      _
    $region9: #{tpu_custom_call.1} parent=1 // pred_fallthru
      _
    %s22 = sadd.s32 0, 0
    %s23 = smul.u32 25, %s22
    %p24 = scmp.lt.s32.totalorder %s23, 24
    %s25 = scalar_select %p24, %s23, 24
    %s26 = smul.addr %s25, 8
    %s27 = scalar_lea.vmem %s0, %s26
    %s28 = sadd.s32 0, 0
    %s29 = smul.u32 25, %s28
    %p30 = scmp.lt.s32.totalorder %s29, 24
    %s31 = scalar_select %p30, %s29, 24
    %s32 = smul.addr %s31, 8
    %s33 = scalar_lea.vmem %s2, %s32
    %s34 = sadd.s32 0, 0
    %s35 = smul.u32 25, %s34
    %p36 = scmp.lt.s32.totalorder %s35, 24
    %s37 = scalar_select %p36, %s35, 24
    %s38 = smul.addr %s37, 8
    %s39 = scalar_lea.vmem %s0, %s38
    %s40 = sadd.s32 0, 0
    %s41 = smul.u32 25, %s40
    %s42 = sadd.s32 0, 0
    %s43 = smul.u32 25, %s42
    %p44 = scmp.lt.s32.totalorder %s43, 24
    %s45 = scalar_select %p44, %s43, 24
    %s46 = smul.addr %s45, 8
    %s47 = scalar_lea.vmem %s2, %s46
    %s48 = sadd.s32 0, 0
    %s49 = smul.u32 25, %s48
    %p50 = scmp.eq.s32.totalorder 0, 0
    // Predicated region
    $region10: #{tpu_custom_call.1} parent=1 // pred_check
      %p51 = pneg %p50
    $region11: #{tpu_custom_call.1} parent=1 // pred_check_branch
      %53 = sbr.rel (%p51) target = $region13
    $region12: #{tpu_custom_call.1} parent=1 // pred_region
      %vm54 = vcmask 7168
      %55 = vst.msk [vmem:[%s47] sm:$0xff] %vm54, inf
      %56 = vst.msk [vmem:[%s47 + $0x8] sm:$0xff] %vm54, inf
      %57 = vst.msk [vmem:[%s47 + $0x10] sm:$0xff] %vm54, inf
      %58 = vst.msk [vmem:[%s47 + $0x18] sm:$0xff] %vm54, inf
      %59 = vst.msk [vmem:[%s47 + $0x20] sm:$0xff] %vm54, inf
      %60 = vst.msk [vmem:[%s47 + $0x28] sm:$0xff] %vm54, inf
      %61 = vst.msk [vmem:[%s47 + $0x30] sm:$0xff] %vm54, inf
      %62 = vst.msk [vmem:[%s47 + $0x38] sm:$0xff] %vm54, inf
      %63 = vst.msk [vmem:[%s47 + $0x40] sm:$0xff] %vm54, inf
      %64 = vst.msk [vmem:[%s47 + $0x48] sm:$0xff] %vm54, inf
      %65 = vst.msk [vmem:[%s47 + $0x50] sm:$0xff] %vm54, inf
      %66 = vst.msk [vmem:[%s47 + $0x58] sm:$0xff] %vm54, inf
      %67 = vst.msk [vmem:[%s47 + $0x60] sm:$0xff] %vm54, inf
      %68 = vst.msk [vmem:[%s47 + $0x68] sm:$0xff] %vm54, inf
      %69 = vst.msk [vmem:[%s47 + $0x70] sm:$0xff] %vm54, inf
      %70 = vst.msk [vmem:[%s47 + $0x78] sm:$0xff] %vm54, inf
      %71 = vst.msk [vmem:[%s47 + $0x80] sm:$0xff] %vm54, inf
      %72 = vst.msk [vmem:[%s47 + $0x88] sm:$0xff] %vm54, inf
      %73 = vst.msk [vmem:[%s47 + $0x90] sm:$0xff] %vm54, inf
      %74 = vst.msk [vmem:[%s47 + $0x98] sm:$0xff] %vm54, inf
      %75 = vst.msk [vmem:[%s47 + $0xa0] sm:$0xff] %vm54, inf
      %76 = vst.msk [vmem:[%s47 + $0xa8] sm:$0xff] %vm54, inf
      %77 = vst.msk [vmem:[%s47 + $0xb0] sm:$0xff] %vm54, inf
      %78 = vst.msk [vmem:[%s47 + $0xb8] sm:$0xff] %vm54, inf
      %79 = vst.msk [vmem:[%s47 + $0xc0] sm:$0xff] %vm54, inf
    $region13: #{tpu_custom_call.1} parent=1 // pred_fallthru
      _
    %p80 = scmp.eq.s32.totalorder 0, 0
    %p81 = pnand %p80, %p50
    %p82 = pneg %p81
    // Predicated region
    $region14: #{tpu_custom_call.1} parent=1 // pred_check
      _
    $region15: #{tpu_custom_call.1} parent=1 // pred_check_branch
      %84 = sbr.rel (%p81) target = $region17
    $region16: #{tpu_custom_call.1} parent=1 // pred_region
      %v85 = vlaneseq
      %vm86 = vcmp.ge.s32.totalorder %v85, 0
      %vm87 = vcmp.lt.s32.totalorder %v85, 384
      %vm88 = vmand %vm86, %vm87
      %89 = vst.msk [vmem:[#allocation2] sm:$0x7] %vm88, inf
    $region17: #{tpu_custom_call.1} parent=1 // pred_fallthru
      _
    %v90 = vld [vmem:[%s39] sm:$0xff]
    %v91 = vld [vmem:[%s39 + $0x8] sm:$0xff]
    %v92 = vld [vmem:[%s39 + $0x10] sm:$0xff]
    %v93 = vld [vmem:[%s39 + $0x18] sm:$0xff]
    %v94 = vld [vmem:[%s39 + $0x20] sm:$0xff]
    %v95 = vld [vmem:[%s39 + $0x28] sm:$0xff]
    %v96 = vld [vmem:[%s39 + $0x30] sm:$0xff]
    %v97 = vld [vmem:[%s39 + $0x38] sm:$0xff]
    %v98 = vld [vmem:[%s39 + $0x40] sm:$0xff]
    %v99 = vld [vmem:[%s39 + $0x48] sm:$0xff]
    %v100 = vld [vmem:[%s39 + $0x50] sm:$0xff]
    %v101 = vld [vmem:[%s39 + $0x58] sm:$0xff]
    %v102 = vld [vmem:[%s39 + $0x60] sm:$0xff]
    %v103 = vld [vmem:[%s39 + $0x68] sm:$0xff]
    %v104 = vld [vmem:[%s39 + $0x70] sm:$0xff]
    %v105 = vld [vmem:[%s39 + $0x78] sm:$0xff]
    %v106 = vld [vmem:[%s39 + $0x80] sm:$0xff]
    %v107 = vld [vmem:[%s39 + $0x88] sm:$0xff]
    %v108 = vld [vmem:[%s39 + $0x90] sm:$0xff]
    %v109 = vld [vmem:[%s39 + $0x98] sm:$0xff]
    %v110 = vld [vmem:[%s39 + $0xa0] sm:$0xff]
    %v111 = vld [vmem:[%s39 + $0xa8] sm:$0xff]
    %v112 = vld [vmem:[%s39 + $0xb0] sm:$0xff]
    %v113 = vld [vmem:[%s39 + $0xb8] sm:$0xff]
    %v114 = vld [vmem:[%s39 + $0xc0] sm:$0xff]
    %v115 = vld [vmem:[%s1] sm:$0xff]
    %v116 = vld [vmem:[%s1 + $0x8] sm:$0xff]
    %v117 = vld [vmem:[%s1 + $0x10] sm:$0xff]
    %v118 = vmul.f32 %v90, -2.0
    %v119 = vmul.f32 %v91, -2.0
    %v120 = vmul.f32 %v92, -2.0
    %v121 = vmul.f32 %v93, -2.0
    %v122 = vmul.f32 %v94, -2.0
    %v123 = vmul.f32 %v95, -2.0
    %v124 = vmul.f32 %v96, -2.0
    %v125 = vmul.f32 %v97, -2.0
    %v126 = vmul.f32 %v98, -2.0
    %v127 = vmul.f32 %v99, -2.0
    %v128 = vmul.f32 %v100, -2.0
    %v129 = vmul.f32 %v101, -2.0
    %v130 = vmul.f32 %v102, -2.0
    %v131 = vmul.f32 %v103, -2.0
    %v132 = vmul.f32 %v104, -2.0
    %v133 = vmul.f32 %v105, -2.0
    %v134 = vmul.f32 %v106, -2.0
    %v135 = vmul.f32 %v107, -2.0
    %v136 = vmul.f32 %v108, -2.0
    %v137 = vmul.f32 %v109, -2.0
    %v138 = vmul.f32 %v110, -2.0
    %v139 = vmul.f32 %v111, -2.0
    %v140 = vmul.f32 %v112, -2.0
    %v141 = vmul.f32 %v113, -2.0
    %v142 = vmul.f32 %v114, -2.0
    %vm143 = vcmask 64512
    %v145 = vsel %vm143, %v118, 0
    %v148 = vsel %vm143, %v119, 0
    %v151 = vsel %vm143, %v120, 0
    %v154 = vsel %vm143, %v121, 0
    %v157 = vsel %vm143, %v122, 0
    %v160 = vsel %vm143, %v123, 0
    %v163 = vsel %vm143, %v124, 0
    %v166 = vsel %vm143, %v125, 0
    %v169 = vsel %vm143, %v126, 0
    %v172 = vsel %vm143, %v127, 0
    %v175 = vsel %vm143, %v128, 0
    %v178 = vsel %vm143, %v129, 0
    %v181 = vsel %vm143, %v130, 0
    %v184 = vsel %vm143, %v131, 0
    %v187 = vsel %vm143, %v132, 0
    %v190 = vsel %vm143, %v133, 0
    %v193 = vsel %vm143, %v134, 0
    %v196 = vsel %vm143, %v135, 0
    %v199 = vsel %vm143, %v136, 0
    %v202 = vsel %vm143, %v137, 0
    %v205 = vsel %vm143, %v138, 0
    %v208 = vsel %vm143, %v139, 0
    %v211 = vsel %vm143, %v140, 0
    %v214 = vsel %vm143, %v141, 0
    %v217 = vsel %vm143, %v142, 0
    %219 = vmatpush.msra.mxu0 0.0
    %220 = vmatpush.msra.mxu0 0.0
    %221 = vmatpush.msra.mxu0 0.0
    %222 = vmatpush.msra.mxu0 0.0
    %223 = vmatpush.msra.mxu0 0.0
    %224 = vmatpush.msra.mxu0 0.0
    %225 = vmatpush.msra.mxu0 0.0
    %226 = vmatpush.msra.mxu0 0.0
    %227 = vmatpush.msra.mxu0 0.0
    %228 = vmatpush.msra.mxu0 0.0
    %229 = vmatpush.msra.mxu0 0.0
    %230 = vmatpush.msra.mxu0 0.0
    %231 = vmatpush.msra.mxu0 0.0
    %232 = vmatpush.msra.mxu0 0.0
    %233 = vmatpush.msra.mxu0 0.0
    %234 = vmatpush.msra.mxu0 %v115
    %235 = vmatmul.f32.gmra.mxu0 %v145
    %v236 = vpop.f32.mrf.mxu0
    %v237 = vadd.f32 0.0, %v236
    %238 = vmatmul.f32.gmra.mxu0 %v148
    %v239 = vpop.f32.mrf.mxu0
    %v240 = vadd.f32 0.0, %v239
    %241 = vmatmul.f32.gmra.mxu0 %v151
    %v242 = vpop.f32.mrf.mxu0
    %v243 = vadd.f32 0.0, %v242
    %244 = vmatmul.f32.gmra.mxu0 %v154
    %v245 = vpop.f32.mrf.mxu0
    %v246 = vadd.f32 0.0, %v245
    %247 = vmatmul.f32.gmra.mxu0 %v157
    %v248 = vpop.f32.mrf.mxu0
    %v249 = vadd.f32 0.0, %v248
    %250 = vmatmul.f32.gmra.mxu0 %v160
    %v251 = vpop.f32.mrf.mxu0
    %v252 = vadd.f32 0.0, %v251
    %253 = vmatmul.f32.gmra.mxu0 %v163
    %v254 = vpop.f32.mrf.mxu0
    %v255 = vadd.f32 0.0, %v254
    %256 = vmatmul.f32.gmra.mxu0 %v166
    %v257 = vpop.f32.mrf.mxu0
    %v258 = vadd.f32 0.0, %v257
    %259 = vmatmul.f32.gmra.mxu0 %v169
    %v260 = vpop.f32.mrf.mxu0
    %v261 = vadd.f32 0.0, %v260
    %262 = vmatmul.f32.gmra.mxu0 %v172
    %v263 = vpop.f32.mrf.mxu0
    %v264 = vadd.f32 0.0, %v263
    %265 = vmatmul.f32.gmra.mxu0 %v175
    %v266 = vpop.f32.mrf.mxu0
    %v267 = vadd.f32 0.0, %v266
    %268 = vmatmul.f32.gmra.mxu0 %v178
    %v269 = vpop.f32.mrf.mxu0
    %v270 = vadd.f32 0.0, %v269
    %271 = vmatmul.f32.gmra.mxu0 %v181
    %v272 = vpop.f32.mrf.mxu0
    %v273 = vadd.f32 0.0, %v272
    %274 = vmatmul.f32.gmra.mxu0 %v184
    %v275 = vpop.f32.mrf.mxu0
    %v276 = vadd.f32 0.0, %v275
    %277 = vmatmul.f32.gmra.mxu0 %v187
    %v278 = vpop.f32.mrf.mxu0
    %v279 = vadd.f32 0.0, %v278
    %280 = vmatmul.f32.gmra.mxu0 %v190
    %v281 = vpop.f32.mrf.mxu0
    %v282 = vadd.f32 0.0, %v281
    %283 = vmatmul.f32.gmra.mxu0 %v193
    %v284 = vpop.f32.mrf.mxu0
    %v285 = vadd.f32 0.0, %v284
    %286 = vmatmul.f32.gmra.mxu0 %v196
    %v287 = vpop.f32.mrf.mxu0
    %v288 = vadd.f32 0.0, %v287
    %289 = vmatmul.f32.gmra.mxu0 %v199
    %v290 = vpop.f32.mrf.mxu0
    %v291 = vadd.f32 0.0, %v290
    %292 = vmatmul.f32.gmra.mxu0 %v202
    %v293 = vpop.f32.mrf.mxu0
    %v294 = vadd.f32 0.0, %v293
    %295 = vmatmul.f32.gmra.mxu0 %v205
    %v296 = vpop.f32.mrf.mxu0
    %v297 = vadd.f32 0.0, %v296
    %298 = vmatmul.f32.gmra.mxu0 %v208
    %v299 = vpop.f32.mrf.mxu0
    %v300 = vadd.f32 0.0, %v299
    %301 = vmatmul.f32.gmra.mxu0 %v211
    %v302 = vpop.f32.mrf.mxu0
    %v303 = vadd.f32 0.0, %v302
    %304 = vmatmul.f32.gmra.mxu0 %v214
    %v305 = vpop.f32.mrf.mxu0
    %v306 = vadd.f32 0.0, %v305
    %307 = vmatmul.f32.gmra.mxu0 %v217
    %v308 = vpop.f32.mrf.mxu0
    %v309 = vadd.f32 0.0, %v308
    %310 = vdwg.mxu0
    %311 = vmatpush.msra.mxu0 0.0
    %312 = vmatpush.msra.mxu0 0.0
    %313 = vmatpush.msra.mxu0 0.0
    %314 = vmatpush.msra.mxu0 0.0
    %315 = vmatpush.msra.mxu0 0.0
    %316 = vmatpush.msra.mxu0 0.0
    %317 = vmatpush.msra.mxu0 0.0
    %318 = vmatpush.msra.mxu0 0.0
    %319 = vmatpush.msra.mxu0 0.0
    %320 = vmatpush.msra.mxu0 0.0
    %321 = vmatpush.msra.mxu0 0.0
    %322 = vmatpush.msra.mxu0 0.0
    %323 = vmatpush.msra.mxu0 0.0
    %324 = vmatpush.msra.mxu0 0.0
    %325 = vmatpush.msra.mxu0 0.0
    %326 = vmatpush.msra.mxu0 %v116
    %327 = vmatmul.f32.gmra.mxu0 %v145
    %v328 = vpop.f32.mrf.mxu0
    %v329 = vadd.f32 0.0, %v328
    %330 = vmatmul.f32.gmra.mxu0 %v148
    %v331 = vpop.f32.mrf.mxu0
    %v332 = vadd.f32 0.0, %v331
    %333 = vmatmul.f32.gmra.mxu0 %v151
    %v334 = vpop.f32.mrf.mxu0
    %v335 = vadd.f32 0.0, %v334
    %336 = vmatmul.f32.gmra.mxu0 %v154
    %v337 = vpop.f32.mrf.mxu0
    %v338 = vadd.f32 0.0, %v337
    %339 = vmatmul.f32.gmra.mxu0 %v157
    %v340 = vpop.f32.mrf.mxu0
    %v341 = vadd.f32 0.0, %v340
    %342 = vmatmul.f32.gmra.mxu0 %v160
    %v343 = vpop.f32.mrf.mxu0
    %v344 = vadd.f32 0.0, %v343
    %345 = vmatmul.f32.gmra.mxu0 %v163
    %v346 = vpop.f32.mrf.mxu0
    %v347 = vadd.f32 0.0, %v346
    %348 = vmatmul.f32.gmra.mxu0 %v166
    %v349 = vpop.f32.mrf.mxu0
    %v350 = vadd.f32 0.0, %v349
    %351 = vmatmul.f32.gmra.mxu0 %v169
    %v352 = vpop.f32.mrf.mxu0
    %v353 = vadd.f32 0.0, %v352
    %354 = vmatmul.f32.gmra.mxu0 %v172
    %v355 = vpop.f32.mrf.mxu0
    %v356 = vadd.f32 0.0, %v355
    %357 = vmatmul.f32.gmra.mxu0 %v175
    %v358 = vpop.f32.mrf.mxu0
    %v359 = vadd.f32 0.0, %v358
    %360 = vmatmul.f32.gmra.mxu0 %v178
    %v361 = vpop.f32.mrf.mxu0
    %v362 = vadd.f32 0.0, %v361
    %363 = vmatmul.f32.gmra.mxu0 %v181
    %v364 = vpop.f32.mrf.mxu0
    %v365 = vadd.f32 0.0, %v364
    %366 = vmatmul.f32.gmra.mxu0 %v184
    %v367 = vpop.f32.mrf.mxu0
    %v368 = vadd.f32 0.0, %v367
    %369 = vmatmul.f32.gmra.mxu0 %v187
    %v370 = vpop.f32.mrf.mxu0
    %v371 = vadd.f32 0.0, %v370
    %372 = vmatmul.f32.gmra.mxu0 %v190
    %v373 = vpop.f32.mrf.mxu0
    %v374 = vadd.f32 0.0, %v373
    %375 = vmatmul.f32.gmra.mxu0 %v193
    %v376 = vpop.f32.mrf.mxu0
    %v377 = vadd.f32 0.0, %v376
    %378 = vmatmul.f32.gmra.mxu0 %v196
    %v379 = vpop.f32.mrf.mxu0
    %v380 = vadd.f32 0.0, %v379
    %381 = vmatmul.f32.gmra.mxu0 %v199
    %v382 = vpop.f32.mrf.mxu0
    %v383 = vadd.f32 0.0, %v382
    %384 = vmatmul.f32.gmra.mxu0 %v202
    %v385 = vpop.f32.mrf.mxu0
    %v386 = vadd.f32 0.0, %v385
    %387 = vmatmul.f32.gmra.mxu0 %v205
    %v388 = vpop.f32.mrf.mxu0
    %v389 = vadd.f32 0.0, %v388
    %390 = vmatmul.f32.gmra.mxu0 %v208
    %v391 = vpop.f32.mrf.mxu0
    %v392 = vadd.f32 0.0, %v391
    %393 = vmatmul.f32.gmra.mxu0 %v211
    %v394 = vpop.f32.mrf.mxu0
    %v395 = vadd.f32 0.0, %v394
    %396 = vmatmul.f32.gmra.mxu0 %v214
    %v397 = vpop.f32.mrf.mxu0
    %v398 = vadd.f32 0.0, %v397
    %399 = vmatmul.f32.gmra.mxu0 %v217
    %v400 = vpop.f32.mrf.mxu0
    %v401 = vadd.f32 0.0, %v400
    %402 = vdwg.mxu0
    %403 = vmatpush.msra.mxu0 0.0
    %404 = vmatpush.msra.mxu0 0.0
    %405 = vmatpush.msra.mxu0 0.0
    %406 = vmatpush.msra.mxu0 0.0
    %407 = vmatpush.msra.mxu0 0.0
    %408 = vmatpush.msra.mxu0 0.0
    %409 = vmatpush.msra.mxu0 0.0
    %410 = vmatpush.msra.mxu0 0.0
    %411 = vmatpush.msra.mxu0 0.0
    %412 = vmatpush.msra.mxu0 0.0
    %413 = vmatpush.msra.mxu0 0.0
    %414 = vmatpush.msra.mxu0 0.0
    %415 = vmatpush.msra.mxu0 0.0
    %416 = vmatpush.msra.mxu0 0.0
    %417 = vmatpush.msra.mxu0 0.0
    %418 = vmatpush.msra.mxu0 %v117
    %419 = vmatmul.f32.gmra.mxu0 %v145
    %v420 = vpop.f32.mrf.mxu0
    %v421 = vadd.f32 0.0, %v420
    %422 = vmatmul.f32.gmra.mxu0 %v148
    %v423 = vpop.f32.mrf.mxu0
    %v424 = vadd.f32 0.0, %v423
    %425 = vmatmul.f32.gmra.mxu0 %v151
    %v426 = vpop.f32.mrf.mxu0
    %v427 = vadd.f32 0.0, %v426
    %428 = vmatmul.f32.gmra.mxu0 %v154
    %v429 = vpop.f32.mrf.mxu0
    %v430 = vadd.f32 0.0, %v429
    %431 = vmatmul.f32.gmra.mxu0 %v157
    %v432 = vpop.f32.mrf.mxu0
    %v433 = vadd.f32 0.0, %v432
    %434 = vmatmul.f32.gmra.mxu0 %v160
    %v435 = vpop.f32.mrf.mxu0
    %v436 = vadd.f32 0.0, %v435
    %437 = vmatmul.f32.gmra.mxu0 %v163
    %v438 = vpop.f32.mrf.mxu0
    %v439 = vadd.f32 0.0, %v438
    %440 = vmatmul.f32.gmra.mxu0 %v166
    %v441 = vpop.f32.mrf.mxu0
    %v442 = vadd.f32 0.0, %v441
    %443 = vmatmul.f32.gmra.mxu0 %v169
    %v444 = vpop.f32.mrf.mxu0
    %v445 = vadd.f32 0.0, %v444
    %446 = vmatmul.f32.gmra.mxu0 %v172
    %v447 = vpop.f32.mrf.mxu0
    %v448 = vadd.f32 0.0, %v447
    %449 = vmatmul.f32.gmra.mxu0 %v175
    %v450 = vpop.f32.mrf.mxu0
    %v451 = vadd.f32 0.0, %v450
    %452 = vmatmul.f32.gmra.mxu0 %v178
    %v453 = vpop.f32.mrf.mxu0
    %v454 = vadd.f32 0.0, %v453
    %455 = vmatmul.f32.gmra.mxu0 %v181
    %v456 = vpop.f32.mrf.mxu0
    %v457 = vadd.f32 0.0, %v456
    %458 = vmatmul.f32.gmra.mxu0 %v184
    %v459 = vpop.f32.mrf.mxu0
    %v460 = vadd.f32 0.0, %v459
    %461 = vmatmul.f32.gmra.mxu0 %v187
    %v462 = vpop.f32.mrf.mxu0
    %v463 = vadd.f32 0.0, %v462
    %464 = vmatmul.f32.gmra.mxu0 %v190
    %v465 = vpop.f32.mrf.mxu0
    %v466 = vadd.f32 0.0, %v465
    %467 = vmatmul.f32.gmra.mxu0 %v193
    %v468 = vpop.f32.mrf.mxu0
    %v469 = vadd.f32 0.0, %v468
    %470 = vmatmul.f32.gmra.mxu0 %v196
    %v471 = vpop.f32.mrf.mxu0
    %v472 = vadd.f32 0.0, %v471
    %473 = vmatmul.f32.gmra.mxu0 %v199
    %v474 = vpop.f32.mrf.mxu0
    %v475 = vadd.f32 0.0, %v474
    %476 = vmatmul.f32.gmra.mxu0 %v202
    %v477 = vpop.f32.mrf.mxu0
    %v478 = vadd.f32 0.0, %v477
    %479 = vmatmul.f32.gmra.mxu0 %v205
    %v480 = vpop.f32.mrf.mxu0
    %v481 = vadd.f32 0.0, %v480
    %482 = vmatmul.f32.gmra.mxu0 %v208
    %v483 = vpop.f32.mrf.mxu0
    %v484 = vadd.f32 0.0, %v483
    %485 = vmatmul.f32.gmra.mxu0 %v211
    %v486 = vpop.f32.mrf.mxu0
    %v487 = vadd.f32 0.0, %v486
    %488 = vmatmul.f32.gmra.mxu0 %v214
    %v489 = vpop.f32.mrf.mxu0
    %v490 = vadd.f32 0.0, %v489
    %491 = vmatmul.f32.gmra.mxu0 %v217
    %v492 = vpop.f32.mrf.mxu0
    %v493 = vadd.f32 0.0, %v492
    %494 = vdwg.mxu0
    %v495 = vmul.f32 %v90, %v90
    %v496 = vmul.f32 %v91, %v91
    %v497 = vmul.f32 %v92, %v92
    %v498 = vmul.f32 %v93, %v93
    %v499 = vmul.f32 %v94, %v94
    %v500 = vmul.f32 %v95, %v95
    %v501 = vmul.f32 %v96, %v96
    %v502 = vmul.f32 %v97, %v97
    %v503 = vmul.f32 %v98, %v98
    %v504 = vmul.f32 %v99, %v99
    %v505 = vmul.f32 %v100, %v100
    %v506 = vmul.f32 %v101, %v101
    %v507 = vmul.f32 %v102, %v102
    %v508 = vmul.f32 %v103, %v103
    %v509 = vmul.f32 %v104, %v104
    %v510 = vmul.f32 %v105, %v105
    %v511 = vmul.f32 %v106, %v106
    %v512 = vmul.f32 %v107, %v107
    %v513 = vmul.f32 %v108, %v108
    %v514 = vmul.f32 %v109, %v109
    %v515 = vmul.f32 %v110, %v110
    %v516 = vmul.f32 %v111, %v111
    %v517 = vmul.f32 %v112, %v112
    %v518 = vmul.f32 %v113, %v113
    %v519 = vmul.f32 %v114, %v114
    %v520 = vsel %vm143, %v495, 0.0
    %521 = vadd.xlane.f32.xlu0 %v520
    %v522 = vpop.xlane.xlu0 %521
    %v523 = vsel %vm143, %v496, 0.0
    %524 = vadd.xlane.f32.xlu0 %v523
    %v525 = vpop.xlane.xlu0 %524
    %v526 = vsel %vm143, %v497, 0.0
    %527 = vadd.xlane.f32.xlu0 %v526
    %v528 = vpop.xlane.xlu0 %527
    %v529 = vsel %vm143, %v498, 0.0
    %530 = vadd.xlane.f32.xlu0 %v529
    %v531 = vpop.xlane.xlu0 %530
    %v532 = vsel %vm143, %v499, 0.0
    %533 = vadd.xlane.f32.xlu0 %v532
    %v534 = vpop.xlane.xlu0 %533
    %v535 = vsel %vm143, %v500, 0.0
    %536 = vadd.xlane.f32.xlu0 %v535
    %v537 = vpop.xlane.xlu0 %536
    %v538 = vsel %vm143, %v501, 0.0
    %539 = vadd.xlane.f32.xlu0 %v538
    %v540 = vpop.xlane.xlu0 %539
    %v541 = vsel %vm143, %v502, 0.0
    %542 = vadd.xlane.f32.xlu0 %v541
    %v543 = vpop.xlane.xlu0 %542
    %v544 = vsel %vm143, %v503, 0.0
    %545 = vadd.xlane.f32.xlu0 %v544
    %v546 = vpop.xlane.xlu0 %545
    %v547 = vsel %vm143, %v504, 0.0
    %548 = vadd.xlane.f32.xlu0 %v547
    %v549 = vpop.xlane.xlu0 %548
    %v550 = vsel %vm143, %v505, 0.0
    %551 = vadd.xlane.f32.xlu0 %v550
    %v552 = vpop.xlane.xlu0 %551
    %v553 = vsel %vm143, %v506, 0.0
    %554 = vadd.xlane.f32.xlu0 %v553
    %v555 = vpop.xlane.xlu0 %554
    %v556 = vsel %vm143, %v507, 0.0
    %557 = vadd.xlane.f32.xlu0 %v556
    %v558 = vpop.xlane.xlu0 %557
    %v559 = vsel %vm143, %v508, 0.0
    %560 = vadd.xlane.f32.xlu0 %v559
    %v561 = vpop.xlane.xlu0 %560
    %v562 = vsel %vm143, %v509, 0.0
    %563 = vadd.xlane.f32.xlu0 %v562
    %v564 = vpop.xlane.xlu0 %563
    %v565 = vsel %vm143, %v510, 0.0
    %566 = vadd.xlane.f32.xlu0 %v565
    %v567 = vpop.xlane.xlu0 %566
    %v568 = vsel %vm143, %v511, 0.0
    %569 = vadd.xlane.f32.xlu0 %v568
    %v570 = vpop.xlane.xlu0 %569
    %v571 = vsel %vm143, %v512, 0.0
    %572 = vadd.xlane.f32.xlu0 %v571
    %v573 = vpop.xlane.xlu0 %572
    %v574 = vsel %vm143, %v513, 0.0
    %575 = vadd.xlane.f32.xlu0 %v574
    %v576 = vpop.xlane.xlu0 %575
    %v577 = vsel %vm143, %v514, 0.0
    %578 = vadd.xlane.f32.xlu0 %v577
    %v579 = vpop.xlane.xlu0 %578
    %v580 = vsel %vm143, %v515, 0.0
    %581 = vadd.xlane.f32.xlu0 %v580
    %v582 = vpop.xlane.xlu0 %581
    %v583 = vsel %vm143, %v516, 0.0
    %584 = vadd.xlane.f32.xlu0 %v583
    %v585 = vpop.xlane.xlu0 %584
    %v586 = vsel %vm143, %v517, 0.0
    %587 = vadd.xlane.f32.xlu0 %v586
    %v588 = vpop.xlane.xlu0 %587
    %v589 = vsel %vm143, %v518, 0.0
    %590 = vadd.xlane.f32.xlu0 %v589
    %v591 = vpop.xlane.xlu0 %590
    %v592 = vsel %vm143, %v519, 0.0
    %593 = vadd.xlane.f32.xlu0 %v592
    %v594 = vpop.xlane.xlu0 %593
    %v595 = vmul.f32 %v115, %v115
    %v596 = vmul.f32 %v116, %v116
    %v597 = vmul.f32 %v117, %v117
    %v598 = vrot.slane %v595, 4
    %v599 = vadd.f32 %v595, %v598
    %v600 = vrot.slane %v599, 2
    %v601 = vadd.f32 %v599, %v600
    %v602 = vrot.slane %v601, 1
    %v603 = vadd.f32 %v601, %v602
    %v604 = vrot.slane %v596, 4
    %v605 = vadd.f32 %v596, %v604
    %v606 = vrot.slane %v605, 2
    %v607 = vadd.f32 %v605, %v606
    %v608 = vrot.slane %v607, 1
    %v609 = vadd.f32 %v607, %v608
    %v610 = vrot.slane %v597, 4
    %v611 = vadd.f32 %v597, %v610
    %v612 = vrot.slane %v611, 2
    %v613 = vadd.f32 %v611, %v612
    %v614 = vrot.slane %v613, 1
    %v615 = vadd.f32 %v613, %v614
    %v616 = vadd.f32 %v603, %v237
    %v617 = vadd.f32 %v609, %v329
    %v618 = vadd.f32 %v615, %v421
    %v619 = vadd.f32 %v603, %v240
    %v620 = vadd.f32 %v609, %v332
    %v621 = vadd.f32 %v615, %v424
    %v622 = vadd.f32 %v603, %v243
    %v623 = vadd.f32 %v609, %v335
    %v624 = vadd.f32 %v615, %v427
    %v625 = vadd.f32 %v603, %v246
    %v626 = vadd.f32 %v609, %v338
    %v627 = vadd.f32 %v615, %v430
    %v628 = vadd.f32 %v603, %v249
    %v629 = vadd.f32 %v609, %v341
    %v630 = vadd.f32 %v615, %v433
    %v631 = vadd.f32 %v603, %v252
    %v632 = vadd.f32 %v609, %v344
    %v633 = vadd.f32 %v615, %v436
    %v634 = vadd.f32 %v603, %v255
    %v635 = vadd.f32 %v609, %v347
    %v636 = vadd.f32 %v615, %v439
    %v637 = vadd.f32 %v603, %v258
    %v638 = vadd.f32 %v609, %v350
    %v639 = vadd.f32 %v615, %v442
    %v640 = vadd.f32 %v603, %v261
    %v641 = vadd.f32 %v609, %v353
    %v642 = vadd.f32 %v615, %v445
    %v643 = vadd.f32 %v603, %v264
    %v644 = vadd.f32 %v609, %v356
    %v645 = vadd.f32 %v615, %v448
    %v646 = vadd.f32 %v603, %v267
    %v647 = vadd.f32 %v609, %v359
    %v648 = vadd.f32 %v615, %v451
    %v649 = vadd.f32 %v603, %v270
    %v650 = vadd.f32 %v609, %v362
    %v651 = vadd.f32 %v615, %v454
    %v652 = vadd.f32 %v603, %v273
    %v653 = vadd.f32 %v609, %v365
    %v654 = vadd.f32 %v615, %v457
    %v655 = vadd.f32 %v603, %v276
    %v656 = vadd.f32 %v609, %v368
    %v657 = vadd.f32 %v615, %v460
    %v658 = vadd.f32 %v603, %v279
    %v659 = vadd.f32 %v609, %v371
    %v660 = vadd.f32 %v615, %v463
    %v661 = vadd.f32 %v603, %v282
    %v662 = vadd.f32 %v609, %v374
    %v663 = vadd.f32 %v615, %v466
    %v664 = vadd.f32 %v603, %v285
    %v665 = vadd.f32 %v609, %v377
    %v666 = vadd.f32 %v615, %v469
    %v667 = vadd.f32 %v603, %v288
    %v668 = vadd.f32 %v609, %v380
    %v669 = vadd.f32 %v615, %v472
    %v670 = vadd.f32 %v603, %v291
    %v671 = vadd.f32 %v609, %v383
    %v672 = vadd.f32 %v615, %v475
    %v673 = vadd.f32 %v603, %v294
    %v674 = vadd.f32 %v609, %v386
    %v675 = vadd.f32 %v615, %v478
    %v676 = vadd.f32 %v603, %v297
    %v677 = vadd.f32 %v609, %v389
    %v678 = vadd.f32 %v615, %v481
    %v679 = vadd.f32 %v603, %v300
    %v680 = vadd.f32 %v609, %v392
    %v681 = vadd.f32 %v615, %v484
    %v682 = vadd.f32 %v603, %v303
    %v683 = vadd.f32 %v609, %v395
    %v684 = vadd.f32 %v615, %v487
    %v685 = vadd.f32 %v603, %v306
    %v686 = vadd.f32 %v609, %v398
    %v687 = vadd.f32 %v615, %v490
    %v688 = vadd.f32 %v603, %v309
    %v689 = vadd.f32 %v609, %v401
    %v690 = vadd.f32 %v615, %v493
    %v691 = vadd.f32 %v522, %v616
    %v692 = vadd.f32 %v522, %v617
    %v693 = vadd.f32 %v522, %v618
    %v694 = vadd.f32 %v525, %v619
    %v695 = vadd.f32 %v525, %v620
    %v696 = vadd.f32 %v525, %v621
    %v697 = vadd.f32 %v528, %v622
    %v698 = vadd.f32 %v528, %v623
    %v699 = vadd.f32 %v528, %v624
    %v700 = vadd.f32 %v531, %v625
    %v701 = vadd.f32 %v531, %v626
    %v702 = vadd.f32 %v531, %v627
    %v703 = vadd.f32 %v534, %v628
    %v704 = vadd.f32 %v534, %v629
    %v705 = vadd.f32 %v534, %v630
    %v706 = vadd.f32 %v537, %v631
    %v707 = vadd.f32 %v537, %v632
    %v708 = vadd.f32 %v537, %v633
    %v709 = vadd.f32 %v540, %v634
    %v710 = vadd.f32 %v540, %v635
    %v711 = vadd.f32 %v540, %v636
    %v712 = vadd.f32 %v543, %v637
    %v713 = vadd.f32 %v543, %v638
    %v714 = vadd.f32 %v543, %v639
    %v715 = vadd.f32 %v546, %v640
    %v716 = vadd.f32 %v546, %v641
    %v717 = vadd.f32 %v546, %v642
    %v718 = vadd.f32 %v549, %v643
    %v719 = vadd.f32 %v549, %v644
    %v720 = vadd.f32 %v549, %v645
    %v721 = vadd.f32 %v552, %v646
    %v722 = vadd.f32 %v552, %v647
    %v723 = vadd.f32 %v552, %v648
    %v724 = vadd.f32 %v555, %v649
    %v725 = vadd.f32 %v555, %v650
    %v726 = vadd.f32 %v555, %v651
    %v727 = vadd.f32 %v558, %v652
    %v728 = vadd.f32 %v558, %v653
    %v729 = vadd.f32 %v558, %v654
    %v730 = vadd.f32 %v561, %v655
    %v731 = vadd.f32 %v561, %v656
    %v732 = vadd.f32 %v561, %v657
    %v733 = vadd.f32 %v564, %v658
    %v734 = vadd.f32 %v564, %v659
    %v735 = vadd.f32 %v564, %v660
    %v736 = vadd.f32 %v567, %v661
    %v737 = vadd.f32 %v567, %v662
    %v738 = vadd.f32 %v567, %v663
    %v739 = vadd.f32 %v570, %v664
    %v740 = vadd.f32 %v570, %v665
    %v741 = vadd.f32 %v570, %v666
    %v742 = vadd.f32 %v573, %v667
    %v743 = vadd.f32 %v573, %v668
    %v744 = vadd.f32 %v573, %v669
    %v745 = vadd.f32 %v576, %v670
    %v746 = vadd.f32 %v576, %v671
    %v747 = vadd.f32 %v576, %v672
    %v748 = vadd.f32 %v579, %v673
    %v749 = vadd.f32 %v579, %v674
    %v750 = vadd.f32 %v579, %v675
    %v751 = vadd.f32 %v582, %v676
    %v752 = vadd.f32 %v582, %v677
    %v753 = vadd.f32 %v582, %v678
    %v754 = vadd.f32 %v585, %v679
    %v755 = vadd.f32 %v585, %v680
    %v756 = vadd.f32 %v585, %v681
    %v757 = vadd.f32 %v588, %v682
    %v758 = vadd.f32 %v588, %v683
    %v759 = vadd.f32 %v588, %v684
    %v760 = vadd.f32 %v591, %v685
    %v761 = vadd.f32 %v591, %v686
    %v762 = vadd.f32 %v591, %v687
    %v763 = vadd.f32 %v594, %v688
    %v764 = vadd.f32 %v594, %v689
    %v765 = vadd.f32 %v594, %v690
    %v766 = vmax.f32 %v691, 0.0
    %v767 = vmax.f32 %v692, 0.0
    %v768 = vmax.f32 %v693, 0.0
    %v769 = vmax.f32 %v694, 0.0
    %v770 = vmax.f32 %v695, 0.0
    %v771 = vmax.f32 %v696, 0.0
    %v772 = vmax.f32 %v697, 0.0
    %v773 = vmax.f32 %v698, 0.0
    %v774 = vmax.f32 %v699, 0.0
    %v775 = vmax.f32 %v700, 0.0
    %v776 = vmax.f32 %v701, 0.0
    %v777 = vmax.f32 %v702, 0.0
    %v778 = vmax.f32 %v703, 0.0
    %v779 = vmax.f32 %v704, 0.0
    %v780 = vmax.f32 %v705, 0.0
    %v781 = vmax.f32 %v706, 0.0
    %v782 = vmax.f32 %v707, 0.0
    %v783 = vmax.f32 %v708, 0.0
    %v784 = vmax.f32 %v709, 0.0
    %v785 = vmax.f32 %v710, 0.0
    %v786 = vmax.f32 %v711, 0.0
    %v787 = vmax.f32 %v712, 0.0
    %v788 = vmax.f32 %v713, 0.0
    %v789 = vmax.f32 %v714, 0.0
    %v790 = vmax.f32 %v715, 0.0
    %v791 = vmax.f32 %v716, 0.0
    %v792 = vmax.f32 %v717, 0.0
    %v793 = vmax.f32 %v718, 0.0
    %v794 = vmax.f32 %v719, 0.0
    %v795 = vmax.f32 %v720, 0.0
    %v796 = vmax.f32 %v721, 0.0
    %v797 = vmax.f32 %v722, 0.0
    %v798 = vmax.f32 %v723, 0.0
    %v799 = vmax.f32 %v724, 0.0
    %v800 = vmax.f32 %v725, 0.0
    %v801 = vmax.f32 %v726, 0.0
    %v802 = vmax.f32 %v727, 0.0
    %v803 = vmax.f32 %v728, 0.0
    %v804 = vmax.f32 %v729, 0.0
    %v805 = vmax.f32 %v730, 0.0
    %v806 = vmax.f32 %v731, 0.0
    %v807 = vmax.f32 %v732, 0.0
    %v808 = vmax.f32 %v733, 0.0
    %v809 = vmax.f32 %v734, 0.0
    %v810 = vmax.f32 %v735, 0.0
    %v811 = vmax.f32 %v736, 0.0
    %v812 = vmax.f32 %v737, 0.0
    %v813 = vmax.f32 %v738, 0.0
    %v814 = vmax.f32 %v739, 0.0
    %v815 = vmax.f32 %v740, 0.0
    %v816 = vmax.f32 %v741, 0.0
    %v817 = vmax.f32 %v742, 0.0
    %v818 = vmax.f32 %v743, 0.0
    %v819 = vmax.f32 %v744, 0.0
    %v820 = vmax.f32 %v745, 0.0
    %v821 = vmax.f32 %v746, 0.0
    %v822 = vmax.f32 %v747, 0.0
    %v823 = vmax.f32 %v748, 0.0
    %v824 = vmax.f32 %v749, 0.0
    %v825 = vmax.f32 %v750, 0.0
    %v826 = vmax.f32 %v751, 0.0
    %v827 = vmax.f32 %v752, 0.0
    %v828 = vmax.f32 %v753, 0.0
    %v829 = vmax.f32 %v754, 0.0
    %v830 = vmax.f32 %v755, 0.0
    %v831 = vmax.f32 %v756, 0.0
    %v832 = vmax.f32 %v757, 0.0
    %v833 = vmax.f32 %v758, 0.0
    %v834 = vmax.f32 %v759, 0.0
    %v835 = vmax.f32 %v760, 0.0
    %v836 = vmax.f32 %v761, 0.0
    %v837 = vmax.f32 %v762, 0.0
    %v838 = vmax.f32 %v763, 0.0
    %v839 = vmax.f32 %v764, 0.0
    %v840 = vmax.f32 %v765, 0.0
    %v841 = vld [vmem:[%s47] sm:$0xff]
    %v842 = vld [vmem:[%s47 + $0x8] sm:$0xff]
    %v843 = vld [vmem:[%s47 + $0x10] sm:$0xff]
    %v844 = vld [vmem:[%s47 + $0x18] sm:$0xff]
    %v845 = vld [vmem:[%s47 + $0x20] sm:$0xff]
    %v846 = vld [vmem:[%s47 + $0x28] sm:$0xff]
    %v847 = vld [vmem:[%s47 + $0x30] sm:$0xff]
    %v848 = vld [vmem:[%s47 + $0x38] sm:$0xff]
    %v849 = vld [vmem:[%s47 + $0x40] sm:$0xff]
    %v850 = vld [vmem:[%s47 + $0x48] sm:$0xff]
    %v851 = vld [vmem:[%s47 + $0x50] sm:$0xff]
    %v852 = vld [vmem:[%s47 + $0x58] sm:$0xff]
    %v853 = vld [vmem:[%s47 + $0x60] sm:$0xff]
    %v854 = vld [vmem:[%s47 + $0x68] sm:$0xff]
    %v855 = vld [vmem:[%s47 + $0x70] sm:$0xff]
    %v856 = vld [vmem:[%s47 + $0x78] sm:$0xff]
    %v857 = vld [vmem:[%s47 + $0x80] sm:$0xff]
    %v858 = vld [vmem:[%s47 + $0x88] sm:$0xff]
    %v859 = vld [vmem:[%s47 + $0x90] sm:$0xff]
    %v860 = vld [vmem:[%s47 + $0x98] sm:$0xff]
    %v861 = vld [vmem:[%s47 + $0xa0] sm:$0xff]
    %v862 = vld [vmem:[%s47 + $0xa8] sm:$0xff]
    %v863 = vld [vmem:[%s47 + $0xb0] sm:$0xff]
    %v864 = vld [vmem:[%s47 + $0xb8] sm:$0xff]
    %v865 = vld [vmem:[%s47 + $0xc0] sm:$0xff]
    %v866 = vmin.f32 %v766, %v767
    %v867 = vmin.f32 %v866, %v768
    %868 = vmin.xlane.f32.xlu0 %v867
    %v869 = vpop.xlane.xlu0 %868
    %v870 = vmin.f32 %v769, %v770
    %v871 = vmin.f32 %v870, %v771
    %872 = vmin.xlane.f32.xlu0 %v871
    %v873 = vpop.xlane.xlu0 %872
    %v874 = vmin.f32 %v772, %v773
    %v875 = vmin.f32 %v874, %v774
    %876 = vmin.xlane.f32.xlu0 %v875
    %v877 = vpop.xlane.xlu0 %876
    %v878 = vmin.f32 %v775, %v776
    %v879 = vmin.f32 %v878, %v777
    %880 = vmin.xlane.f32.xlu0 %v879
    %v881 = vpop.xlane.xlu0 %880
    %v882 = vmin.f32 %v778, %v779
    %v883 = vmin.f32 %v882, %v780
    %884 = vmin.xlane.f32.xlu0 %v883
    %v885 = vpop.xlane.xlu0 %884
    %v886 = vmin.f32 %v781, %v782
    %v887 = vmin.f32 %v886, %v783
    %888 = vmin.xlane.f32.xlu0 %v887
    %v889 = vpop.xlane.xlu0 %888
    %v890 = vmin.f32 %v784, %v785
    %v891 = vmin.f32 %v890, %v786
    %892 = vmin.xlane.f32.xlu0 %v891
    %v893 = vpop.xlane.xlu0 %892
    %v894 = vmin.f32 %v787, %v788
    %v895 = vmin.f32 %v894, %v789
    %896 = vmin.xlane.f32.xlu0 %v895
    %v897 = vpop.xlane.xlu0 %896
    %v898 = vmin.f32 %v790, %v791
    %v899 = vmin.f32 %v898, %v792
    %900 = vmin.xlane.f32.xlu0 %v899
    %v901 = vpop.xlane.xlu0 %900
    %v902 = vmin.f32 %v793, %v794
    %v903 = vmin.f32 %v902, %v795
    %904 = vmin.xlane.f32.xlu0 %v903
    %v905 = vpop.xlane.xlu0 %904
    %v906 = vmin.f32 %v796, %v797
    %v907 = vmin.f32 %v906, %v798
    %908 = vmin.xlane.f32.xlu0 %v907
    %v909 = vpop.xlane.xlu0 %908
    %v910 = vmin.f32 %v799, %v800
    %v911 = vmin.f32 %v910, %v801
    %912 = vmin.xlane.f32.xlu0 %v911
    %v913 = vpop.xlane.xlu0 %912
    %v914 = vmin.f32 %v802, %v803
    %v915 = vmin.f32 %v914, %v804
    %916 = vmin.xlane.f32.xlu0 %v915
    %v917 = vpop.xlane.xlu0 %916
    %v918 = vmin.f32 %v805, %v806
    %v919 = vmin.f32 %v918, %v807
    %920 = vmin.xlane.f32.xlu0 %v919
    %v921 = vpop.xlane.xlu0 %920
    %v922 = vmin.f32 %v808, %v809
    %v923 = vmin.f32 %v922, %v810
    %924 = vmin.xlane.f32.xlu0 %v923
    %v925 = vpop.xlane.xlu0 %924
    %v926 = vmin.f32 %v811, %v812
    %v927 = vmin.f32 %v926, %v813
    %928 = vmin.xlane.f32.xlu0 %v927
    %v929 = vpop.xlane.xlu0 %928
    %v930 = vmin.f32 %v814, %v815
    %v931 = vmin.f32 %v930, %v816
    %932 = vmin.xlane.f32.xlu0 %v931
    %v933 = vpop.xlane.xlu0 %932
    %v934 = vmin.f32 %v817, %v818
    %v935 = vmin.f32 %v934, %v819
    %936 = vmin.xlane.f32.xlu0 %v935
    %v937 = vpop.xlane.xlu0 %936
    %v938 = vmin.f32 %v820, %v821
    %v939 = vmin.f32 %v938, %v822
    %940 = vmin.xlane.f32.xlu0 %v939
    %v941 = vpop.xlane.xlu0 %940
    %v942 = vmin.f32 %v823, %v824
    %v943 = vmin.f32 %v942, %v825
    %944 = vmin.xlane.f32.xlu0 %v943
    %v945 = vpop.xlane.xlu0 %944
    %v946 = vmin.f32 %v826, %v827
    %v947 = vmin.f32 %v946, %v828
    %948 = vmin.xlane.f32.xlu0 %v947
    %v949 = vpop.xlane.xlu0 %948
    %v950 = vmin.f32 %v829, %v830
    %v951 = vmin.f32 %v950, %v831
    %952 = vmin.xlane.f32.xlu0 %v951
    %v953 = vpop.xlane.xlu0 %952
    %v954 = vmin.f32 %v832, %v833
    %v955 = vmin.f32 %v954, %v834
    %956 = vmin.xlane.f32.xlu0 %v955
    %v957 = vpop.xlane.xlu0 %956
    %v958 = vmin.f32 %v835, %v836
    %v959 = vmin.f32 %v958, %v837
    %960 = vmin.xlane.f32.xlu0 %v959
    %v961 = vpop.xlane.xlu0 %960
    %v962 = vmin.f32 %v838, %v839
    %v963 = vmin.f32 %v962, %v840
    %964 = vmin.xlane.f32.xlu0 %v963
    %v965 = vpop.xlane.xlu0 %964
    %v966 = vmin.f32 %v841, %v869
    %v967 = vmin.f32 %v842, %v873
    %v968 = vmin.f32 %v843, %v877
    %v969 = vmin.f32 %v844, %v881
    %v970 = vmin.f32 %v845, %v885
    %v971 = vmin.f32 %v846, %v889
    %v972 = vmin.f32 %v847, %v893
    %v973 = vmin.f32 %v848, %v897
    %v974 = vmin.f32 %v849, %v901
    %v975 = vmin.f32 %v850, %v905
    %v976 = vmin.f32 %v851, %v909
    %v977 = vmin.f32 %v852, %v913
    %v978 = vmin.f32 %v853, %v917
    %v979 = vmin.f32 %v854, %v921
    %v980 = vmin.f32 %v855, %v925
    %v981 = vmin.f32 %v856, %v929
    %v982 = vmin.f32 %v857, %v933
    %v983 = vmin.f32 %v858, %v937
    %v984 = vmin.f32 %v859, %v941
    %v985 = vmin.f32 %v860, %v945
    %v986 = vmin.f32 %v861, %v949
    %v987 = vmin.f32 %v862, %v953
    %v988 = vmin.f32 %v863, %v957
    %v989 = vmin.f32 %v864, %v961
    %v990 = vmin.f32 %v865, %v965
    %vm991 = vcmask 7168
    %992 = vst.msk [vmem:[%s47] sm:$0xff] %vm991, %v966
    %993 = vst.msk [vmem:[%s47 + $0x8] sm:$0xff] %vm991, %v967
    %994 = vst.msk [vmem:[%s47 + $0x10] sm:$0xff] %vm991, %v968
    %995 = vst.msk [vmem:[%s47 + $0x18] sm:$0xff] %vm991, %v969
    %996 = vst.msk [vmem:[%s47 + $0x20] sm:$0xff] %vm991, %v970
    %997 = vst.msk [vmem:[%s47 + $0x28] sm:$0xff] %vm991, %v971
    %998 = vst.msk [vmem:[%s47 + $0x30] sm:$0xff] %vm991, %v972
    %999 = vst.msk [vmem:[%s47 + $0x38] sm:$0xff] %vm991, %v973
    %1000 = vst.msk [vmem:[%s47 + $0x40] sm:$0xff] %vm991, %v974
    %1001 = vst.msk [vmem:[%s47 + $0x48] sm:$0xff] %vm991, %v975
    %1002 = vst.msk [vmem:[%s47 + $0x50] sm:$0xff] %vm991, %v976
    %1003 = vst.msk [vmem:[%s47 + $0x58] sm:$0xff] %vm991, %v977
    %1004 = vst.msk [vmem:[%s47 + $0x60] sm:$0xff] %vm991, %v978
    %1005 = vst.msk [vmem:[%s47 + $0x68] sm:$0xff] %vm991, %v979
    %1006 = vst.msk [vmem:[%s47 + $0x70] sm:$0xff] %vm991, %v980
    %1007 = vst.msk [vmem:[%s47 + $0x78] sm:$0xff] %vm991, %v981
    %1008 = vst.msk [vmem:[%s47 + $0x80] sm:$0xff] %vm991, %v982
    %1009 = vst.msk [vmem:[%s47 + $0x88] sm:$0xff] %vm991, %v983
    %1010 = vst.msk [vmem:[%s47 + $0x90] sm:$0xff] %vm991, %v984
    %1011 = vst.msk [vmem:[%s47 + $0x98] sm:$0xff] %vm991, %v985
    %1012 = vst.msk [vmem:[%s47 + $0xa0] sm:$0xff] %vm991, %v986
    %1013 = vst.msk [vmem:[%s47 + $0xa8] sm:$0xff] %vm991, %v987
    %1014 = vst.msk [vmem:[%s47 + $0xb0] sm:$0xff] %vm991, %v988
    %1015 = vst.msk [vmem:[%s47 + $0xb8] sm:$0xff] %vm991, %v989
    %1016 = vst.msk [vmem:[%s47 + $0xc0] sm:$0xff] %vm991, %v990
    %s1017 = smul.u32 0, 384
    %v1018 = vmin.f32 %v766, %v772
    %v1019 = vmin.f32 %v769, %v775
    %v1020 = vmin.f32 %v1018, %v778
    %v1021 = vmin.f32 %v1019, %v781
    %v1022 = vmin.f32 %v1020, %v784
    %v1023 = vmin.f32 %v1021, %v787
    %v1024 = vmin.f32 %v1022, %v790
    %v1025 = vmin.f32 %v1023, %v793
    %v1026 = vmin.f32 %v1024, %v796
    %v1027 = vmin.f32 %v1025, %v799
    %v1028 = vmin.f32 %v1026, %v802
    %v1029 = vmin.f32 %v1027, %v805
    %v1030 = vmin.f32 %v1028, %v808
    %v1031 = vmin.f32 %v1029, %v811
    %v1032 = vmin.f32 %v1030, %v814
    %v1033 = vmin.f32 %v1031, %v817
    %v1034 = vmin.f32 %v1032, %v820
    %v1035 = vmin.f32 %v1033, %v823
    %v1036 = vmin.f32 %v1034, %v826
    %v1037 = vmin.f32 %v1035, %v829
    %v1038 = vmin.f32 %v1036, %v832
    %v1039 = vmin.f32 %v1037, %v835
    %v1040 = vmin.f32 %v1038, %v838
    %v1041 = vmin.f32 %v1040, %v1039
    %v1042 = vrot.slane %v1041, 4
    %v1043 = vmin.f32 %v1041, %v1042
    %v1044 = vrot.slane %v1043, 2
    %v1045 = vmin.f32 %v1043, %v1044
    %v1046 = vrot.slane %v1045, 1
    %v1047 = vmin.f32 %v1045, %v1046
    %v1048 = vmin.f32 %v767, %v773
    %v1049 = vmin.f32 %v770, %v776
    %v1050 = vmin.f32 %v1048, %v779
    %v1051 = vmin.f32 %v1049, %v782
    %v1052 = vmin.f32 %v1050, %v785
    %v1053 = vmin.f32 %v1051, %v788
    %v1054 = vmin.f32 %v1052, %v791
    %v1055 = vmin.f32 %v1053, %v794
    %v1056 = vmin.f32 %v1054, %v797
    %v1057 = vmin.f32 %v1055, %v800
    %v1058 = vmin.f32 %v1056, %v803
    %v1059 = vmin.f32 %v1057, %v806
    %v1060 = vmin.f32 %v1058, %v809
    %v1061 = vmin.f32 %v1059, %v812
    %v1062 = vmin.f32 %v1060, %v815
    %v1063 = vmin.f32 %v1061, %v818
    %v1064 = vmin.f32 %v1062, %v821
    %v1065 = vmin.f32 %v1063, %v824
    %v1066 = vmin.f32 %v1064, %v827
    %v1067 = vmin.f32 %v1065, %v830
    %v1068 = vmin.f32 %v1066, %v833
    %v1069 = vmin.f32 %v1067, %v836
    %v1070 = vmin.f32 %v1068, %v839
    %v1071 = vmin.f32 %v1070, %v1069
    %v1072 = vrot.slane %v1071, 4
    %v1073 = vmin.f32 %v1071, %v1072
    %v1074 = vrot.slane %v1073, 2
    %v1075 = vmin.f32 %v1073, %v1074
    %v1076 = vrot.slane %v1075, 1
    %v1077 = vmin.f32 %v1075, %v1076
    %v1078 = vmin.f32 %v768, %v774
    %v1079 = vmin.f32 %v771, %v777
    %v1080 = vmin.f32 %v1078, %v780
    %v1081 = vmin.f32 %v1079, %v783
    %v1082 = vmin.f32 %v1080, %v786
    %v1083 = vmin.f32 %v1081, %v789
    %v1084 = vmin.f32 %v1082, %v792
    %v1085 = vmin.f32 %v1083, %v795
    %v1086 = vmin.f32 %v1084, %v798
    %v1087 = vmin.f32 %v1085, %v801
    %v1088 = vmin.f32 %v1086, %v804
    %v1089 = vmin.f32 %v1087, %v807
    %v1090 = vmin.f32 %v1088, %v810
    %v1091 = vmin.f32 %v1089, %v813
    %v1092 = vmin.f32 %v1090, %v816
    %v1093 = vmin.f32 %v1091, %v819
    %v1094 = vmin.f32 %v1092, %v822
    %v1095 = vmin.f32 %v1093, %v825
    %v1096 = vmin.f32 %v1094, %v828
    %v1097 = vmin.f32 %v1095, %v831
    %v1098 = vmin.f32 %v1096, %v834
    %v1099 = vmin.f32 %v1097, %v837
    %v1100 = vmin.f32 %v1098, %v840
    %v1101 = vmin.f32 %v1100, %v1099
    %v1102 = vrot.slane %v1101, 4
    %v1103 = vmin.f32 %v1101, %v1102
    %v1104 = vrot.slane %v1103, 2
    %v1105 = vmin.f32 %v1103, %v1104
    %v1106 = vrot.slane %v1105, 1
    %v1107 = vmin.f32 %v1105, %v1106
    %s1108 = sshra.s32 %s1017, 7
    %s1109 = sand.u32 %s1017, 127
    %s1110 = scalar_lea.vmem [#allocation2], %s1108
    %v1111 = vld [vmem:[%s1110] sm:$0x7]
    %v1115 = vrot.slane %v1077, 7
    %v1116 = vrot.slane %v1107, 6
    %vm1117 = vcmask 1040384
    %v1118 = vsel %vm1117, %v1047, %v1115
    %vm1119 = vcmask 1041408
    %v1120 = vsel %vm1119, %v1118, %v1116
    %v1122 = vmin.f32 %v1111, %v1120
    %v1123 = vlaneseq
    %vm1124 = vcmp.ge.s32.totalorder %v1123, 0
    %vm1125 = vcmp.lt.s32.totalorder %v1123, 384
    %vm1126 = vmand %vm1124, %vm1125
    %1127 = vst.msk [vmem:[%s1110] sm:$0x7] %vm1126, %v1122
    %s1128 = sadd.s32 0, 0
    %s1129 = smul.u32 25, %s1128
    %p1130 = scmp.lt.s32.totalorder %s1129, 24
    %s1131 = scalar_select %p1130, %s1129, 24
    %s1132 = smul.addr %s1131, 8
    %s1133 = scalar_lea.vmem %s2, %s1132
    // Predicated region
    $region18: #{tpu_custom_call.1} parent=1 // pred_check
      _
    $region19: #{tpu_custom_call.1} parent=1 // pred_check_branch
      %1135 = sbr.rel (0) target = $region21
    $region20: #{tpu_custom_call.1} parent=1 // pred_region
      %s1136 = sadd.s32 0, 0
      %s1137 = smul.u32 25, %s1136
    $region21: #{tpu_custom_call.1} parent=1 // pred_fallthru
      _
    // Predicated region
    $region22: #{tpu_custom_call.1} parent=1 // pred_check
      _
    $region23: #{tpu_custom_call.1} parent=1 // pred_check_branch
      %1139 = sbr.rel (0) target = $region25
    $region24: #{tpu_custom_call.1} parent=1 // pred_region
      %1141 = vsyncadd [#allocation3], 0
      %s1143 = sshll.u32 [#allocation2], 4
      %s1144 = int_to_ptr.vmem [resolvable:$true] %s1143
      %s1145 = sshll.u32 %s3, 4
      %s1146 = int_to_ptr.hbm [resolvable:$true] %s1145
      %1148 = dma.vmem_to_hbm [thread:$0]  %s1144, 48, %s1146, [#allocation3]
    $region25: #{tpu_custom_call.1} parent=1 // pred_fallthru
      _
    // Predicated region
    $region26: #{tpu_custom_call.1} parent=1 // pred_check
      _
    $region27: #{tpu_custom_call.1} parent=1 // pred_check_branch
      %1150 = sbr.rel (0) target = $region29
    $region28: #{tpu_custom_call.1} parent=1 // pred_region
      %s1151 = sadd.s32 0, 0
      %s1152 = smul.u32 25, %s1151
      %p1153 = scmp.lt.s32.totalorder %s1152, 24
      %s1154 = scalar_select %p1153, %s1152, 24
      %s1155 = smul.addr %s1154, 8
      %s1156 = scalar_lea.vmem %s2, %s1155
    $region29: #{tpu_custom_call.1} parent=1 // pred_fallthru
      _
    // Predicated region
    $region30: #{tpu_custom_call.1} parent=1 // pred_check
      _
    $region31: #{tpu_custom_call.1} parent=1 // pred_check_branch
      %1158 = sbr.rel (0) target = $region33
    $region32: #{tpu_custom_call.1} parent=1 // pred_region
      %1160 = dma.done [#allocation3], 48
    $region33: #{tpu_custom_call.1} parent=1 // pred_fallthru
      _
    %1161 = vsyncpa [#allocation3], 1

</llo_original>
